<compile_context>
chip_gen: v7x
topology: tpu7x:2x2x1
jax: 0.10.0
libtpu: 0.0.40
codegen_flags: <defaults>
</compile_context>

<pallas_src>
import functools

import jax
import jax.numpy as jnp
from jax.experimental import pallas as pl
from jax.experimental.pallas import tpu as pltpu


def _round_up(x, m):
    return (x + m - 1) // m * m


def _head_kernel(x_ref, w1_ref, b1_ref, w2_ref, b2_ref, o_ref, acc_ref):
    """One (batch-tile, hidden-chunk) grid step.

    out = sum_c tanh(x @ W1[:, c] + b1[c]) @ W2[c, :] + b2
    (exact: tanh is elementwise over the chunked hidden axis).
    """
    c = pl.program_id(1)

    @pl.when(c == 0)
    def _():
        acc_ref[...] = jnp.zeros_like(acc_ref)

    x = x_ref[...].astype(jnp.bfloat16)                     # f32 tile -> bf16 in-kernel
    h = jnp.dot(x, w1_ref[...], preferred_element_type=jnp.float32)
    h = jnp.tanh(h + b1_ref[...])                           # f32 bias + tanh
    acc_ref[...] += jnp.dot(h.astype(w2_ref.dtype), w2_ref[...],
                            preferred_element_type=jnp.float32)

    @pl.when(c == pl.num_programs(1) - 1)
    def _():
        o_ref[...] = (acc_ref[...] + b2_ref[...]).astype(o_ref.dtype)


def prepare_roberta_head_params(w1, b1, w2, b2):
    """One-time parameter prep (hoisted out of the per-call path).

    Weights are laid out [in_features, out_features] (transpose of nn.Linear.weight).
    Returns bf16 matmul operands and f32 biases, with the label axis zero-padded up to
    a 128-lane-dense slab, plus the true num_labels.
    """
    num_labels = int(w2.shape[1])
    nl = _round_up(num_labels, 128)
    w1b = w1.astype(jnp.bfloat16)
    w2b = jnp.pad(w2, ((0, 0), (0, nl - num_labels))).astype(jnp.bfloat16)
    b1f = b1.reshape(1, -1).astype(jnp.float32)
    b2f = jnp.pad(b2.reshape(1, -1), ((0, 0), (0, nl - num_labels))).astype(jnp.float32)
    return w1b, b1f, w2b, b2f, num_labels


@functools.partial(jax.jit, static_argnames=("num_labels", "block_b"))
def roberta_classification_head(features, w1b, b1f, w2b, b2f, *,
                                num_labels, block_b=512):
    """features: [B, S, H]; prepared params from prepare_roberta_head_params.
    Returns logits [B, num_labels]."""
    B, S, H = features.shape
    NL = w2b.shape[1]
    out_dtype = features.dtype
    out_bytes = jnp.dtype(out_dtype).itemsize

    # --- batch tiling: no wrapper pad; last block may be ragged -------------
    if B > block_b:
        TB = block_b
    elif B <= 8:
        TB = B                                     # single block == full batch dim
    else:
        TB = _round_up(pl.cdiv(B, 2), 8)           # >= 2 grid steps (v7x megacore)
    n_bt = pl.cdiv(B, TB)

    # --- CLS select fused into the x BlockSpec ------------------------------
    # (B, S, H) -> (B, S*H) is a free bitcast view; the (TB, H) block at column
    # block 0 is exactly the CLS rows.  Needs H % 128 == 0 (lane rule).
    if H % 128 == 0:
        x_in = features.reshape(B, S * H)
    else:
        x_in = features[:, 0, :]                   # fallback: one small slice pass
    x_spec = pl.BlockSpec((TB, H), lambda i, c: (i, 0))

    # --- hidden-chunk axis: stream weights only in the single-batch-tile case
    if n_bt == 1 and H % 256 == 0:
        HC = 256
    else:
        HC = H                                     # weights stay VMEM-resident
    n_c = H // HC
    grid = (n_bt, n_c)

    # --- VMEM budget ---------------------------------------------------------
    est = (2 * TB * H * 4                          # x tile (f32), double-buffered
           + 2 * H * HC * 2                        # W1 chunk (bf16)
           + 2 * HC * NL * 2                       # W2 chunk (bf16)
           + 2 * (HC + NL) * 4                     # biases (f32)
           + 2 * TB * NL * out_bytes               # out tile
           + TB * NL * 4                           # f32 accumulator scratch
           + 3 * TB * max(H, NL) * 4)              # intermediates / slack
    vmem_limit = int(min(48 * 2**20, max(16 * 2**20, 2 * est)))

    cost = pl.CostEstimate(
        flops=2 * B * H * (H + NL),
        transcendentals=B * H,
        bytes_accessed=(B * H * 4 + H * H * 2 + H * NL * 2
                        + (H + NL) * 4 + B * NL * out_bytes))

    out = pl.pallas_call(
        _head_kernel,
        out_shape=jax.ShapeDtypeStruct((B, NL), out_dtype),
        grid=grid,
        in_specs=[
            x_spec,                                          # x: streamed per batch tile
            # Weights/biases: constant across the batch axis (kept VMEM-resident);
            # streamed along the chunk axis only when there is a single batch tile.
            # (pl.Buffered(1) could halve their footprint; VMEM is not binding here.)
            pl.BlockSpec((H, HC), lambda i, c: (0, c)),      # W1 chunk
            pl.BlockSpec((1, HC), lambda i, c: (0, c)),      # b1 chunk
            pl.BlockSpec((HC, NL), lambda i, c: (c, 0)),     # W2 chunk (padded)
            pl.BlockSpec((1, NL), lambda i, c: (0, 0)),      # b2 (padded)
        ],
        out_specs=pl.BlockSpec((TB, NL), lambda i, c: (i, 0)),
        scratch_shapes=[pltpu.VMEM((TB, NL), jnp.float32)],
        compiler_params=pltpu.CompilerParams(
            dimension_semantics=("parallel", "arbitrary"),
            vmem_limit_bytes=vmem_limit,
        ),
        cost_estimate=cost,
    )(x_in, w1b, b1f, w2b, b2f)

    return out[:, :num_labels]


def reference(features, w1, b1, w2, b2):
    x = features[:, 0, :]
    h = jnp.tanh(x @ w1 + b1)
    return h @ w2 + b2


if __name__ == "__main__":
    # Small shapes consistent with the module's forward (H multiple of 128 so the
    # fused CLS-select path is exercised, as it would be for real RoBERTa sizes).
    batch, seq, hidden, num_labels = 8, 8, 128, 4

    key = jax.random.PRNGKey(0)
    kf, kw1, kb1, kw2, kb2 = jax.random.split(key, 5)

    features = jax.random.normal(kf, (batch, seq, hidden), dtype=jnp.float32)

    # Deterministic nn.Linear-style init; weights stored [in, out].
    bound = 1.0 / (hidden ** 0.5)
    w1 = jax.random.uniform(kw1, (hidden, hidden), jnp.float32, -bound, bound)
    b1 = jax.random.uniform(kb1, (hidden,), jnp.float32, -bound, bound)
    w2 = jax.random.uniform(kw2, (hidden, num_labels), jnp.float32, -bound, bound)
    b2 = jax.random.uniform(kb2, (num_labels,), jnp.float32, -bound, bound)

    # One-time parameter prep (hoisted out of the per-call path).
    w1b, b1f, w2b, b2f, nl = prepare_roberta_head_params(w1, b1, w2, b2)

    out = roberta_classification_head(features, w1b, b1f, w2b, b2f, num_labels=nl)
    out = jax.block_until_ready(out)

    ref = reference(features, w1, b1, w2, b2)
    assert out.shape == (batch, num_labels)
    # bf16 matmul operands with f32 accumulation -> ~2-3 digit agreement.
    assert jnp.allclose(out, ref, atol=2e-2, rtol=2e-2), (
        float(jnp.max(jnp.abs(out - ref))))

    print("KERNEL_OK")
</pallas_src>

<mosaic_0001>
module attributes {stable_mosaic.version = 11 : i64} {
  func.func @_head_kernel(%arg0: i32, %arg1: i32, %arg2: memref<8x128xf32, #tpu.memory_space<vmem>>, %arg3: memref<128x128xbf16, #tpu.memory_space<vmem>>, %arg4: memref<1x128xf32, #tpu.memory_space<vmem>>, %arg5: memref<128x128xbf16, #tpu.memory_space<vmem>>, %arg6: memref<1x128xf32, #tpu.memory_space<vmem>>, %arg7: memref<8x128xf32, #tpu.memory_space<vmem>>, %arg8: memref<8x128xf32, #tpu.memory_space<vmem>>) attributes {dimension_semantics = [#tpu.dimension_semantics<parallel>, #tpu.dimension_semantics<arbitrary>], iteration_bounds = array<i64: 1, 1>, scalar_prefetch = 0 : i64, scratch_operands = 1 : i64, tpu.core_type = #tpu.core_type<tc>, window_params = [{transform_indices = @transform_0, window_bounds = array<i64: 8, 128>}, {transform_indices = @transform_1, window_bounds = array<i64: 128, 128>}, {transform_indices = @transform_2, window_bounds = array<i64: 1, 128>}, {transform_indices = @transform_3, window_bounds = array<i64: 128, 128>}, {pipeline_mode = #tpu.pipeline_mode<synchronous>, transform_indices = @transform_4, window_bounds = array<i64: 1, 128>}, {transform_indices = @transform_5, window_bounds = array<i64: 8, 128>}]} {
    %c0_i32 = arith.constant 0 : i32
    %0 = arith.cmpi eq, %arg1, %c0_i32 : i32
    %1 = arith.extui %0 : i1 to i32
    %c0_i32_0 = arith.constant 0 : i32
    %2 = arith.cmpi ne, %1, %c0_i32_0 : i32
    scf.if %2 {
      %cst_15 = arith.constant 0.000000e+00 : f32
      %20 = vector.broadcast %cst_15 : f32 to vector<8x128xf32>
      %c0_16 = arith.constant 0 : index
      %c0_17 = arith.constant 0 : index
      %21 = vector.load %arg8[%c0_16, %c0_17] : memref<8x128xf32, #tpu.memory_space<vmem>>, vector<8x128xf32>
      tpu.vector_store %arg8[%c0_16, %c0_17], %20 {strides = array<i32>} : memref<8x128xf32, #tpu.memory_space<vmem>>, vector<8x128xf32>,
    } else {
    }
    %c0 = arith.constant 0 : index
    %c0_1 = arith.constant 0 : index
    %3 = vector.load %arg2[%c0, %c0_1] : memref<8x128xf32, #tpu.memory_space<vmem>>, vector<8x128xf32>
    %4 = arith.truncf %3 : vector<8x128xf32> to vector<8x128xbf16>
    %c0_2 = arith.constant 0 : index
    %c0_3 = arith.constant 0 : index
    %5 = vector.load %arg3[%c0_2, %c0_3] : memref<128x128xbf16, #tpu.memory_space<vmem>>, vector<128x128xbf16>
    %cst = arith.constant dense<0.000000e+00> : vector<8x128xf32>
    %6 = tpu.matmul %4, %5, %cst {dimension_numbers = #tpu.dot_dimension_numbers<[1], [0], [0], [1], [0, 0, 1, 1], [], []>} : vector<8x128xbf16>, vector<128x128xbf16>, vector<8x128xf32> -> vector<8x128xf32>
    %c0_4 = arith.constant 0 : index
    %c0_5 = arith.constant 0 : index
    %7 = vector.load %arg4[%c0_4, %c0_5] : memref<1x128xf32, #tpu.memory_space<vmem>>, vector<1x128xf32>
    %8 = vector.broadcast %7 : vector<1x128xf32> to vector<8x128xf32>
    %9 = arith.addf %6, %8 : vector<8x128xf32>
    %10 = math.tanh %9 : vector<8x128xf32>
    %c0_6 = arith.constant 0 : index
    %c0_7 = arith.constant 0 : index
    %11 = vector.load %arg8[%c0_6, %c0_7] : memref<8x128xf32, #tpu.memory_space<vmem>>, vector<8x128xf32>
    %12 = arith.truncf %10 : vector<8x128xf32> to vector<8x128xbf16>
    %c0_8 = arith.constant 0 : index
    %c0_9 = arith.constant 0 : index
    %13 = vector.load %arg5[%c0_8, %c0_9] : memref<128x128xbf16, #tpu.memory_space<vmem>>, vector<128x128xbf16>
    %cst_10 = arith.constant dense<0.000000e+00> : vector<8x128xf32>
    %14 = tpu.matmul %12, %13, %cst_10 {dimension_numbers = #tpu.dot_dimension_numbers<[1], [0], [0], [1], [0, 0, 1, 1], [], []>} : vector<8x128xbf16>, vector<128x128xbf16>, vector<8x128xf32> -> vector<8x128xf32>
    %15 = arith.addf %11, %14 : vector<8x128xf32>
    %c0_11 = arith.constant 0 : index
    %c0_12 = arith.constant 0 : index
    %16 = vector.load %arg8[%c0_11, %c0_12] : memref<8x128xf32, #tpu.memory_space<vmem>>, vector<8x128xf32>
    tpu.vector_store %arg8[%c0_11, %c0_12], %15 {strides = array<i32>} : memref<8x128xf32, #tpu.memory_space<vmem>>, vector<8x128xf32>,
    %c0_i32_13 = arith.constant 0 : i32
    %17 = arith.cmpi eq, %arg1, %c0_i32_13 : i32
    %18 = arith.extui %17 : i1 to i32
    %c0_i32_14 = arith.constant 0 : i32
    %19 = arith.cmpi ne, %18, %c0_i32_14 : i32
    scf.if %19 {
      %c0_15 = arith.constant 0 : index
      %c0_16 = arith.constant 0 : index
      %20 = vector.load %arg8[%c0_15, %c0_16] : memref<8x128xf32, #tpu.memory_space<vmem>>, vector<8x128xf32>
      %c0_17 = arith.constant 0 : index
      %c0_18 = arith.constant 0 : index
      %21 = vector.load %arg6[%c0_17, %c0_18] : memref<1x128xf32, #tpu.memory_space<vmem>>, vector<1x128xf32>
      %22 = vector.broadcast %21 : vector<1x128xf32> to vector<8x128xf32>
      %23 = arith.addf %20, %22 : vector<8x128xf32>
      %c0_19 = arith.constant 0 : index
      %c0_20 = arith.constant 0 : index
      %24 = vector.load %arg7[%c0_19, %c0_20] : memref<8x128xf32, #tpu.memory_space<vmem>>, vector<8x128xf32>
      tpu.vector_store %arg7[%c0_19, %c0_20], %23 {strides = array<i32>} : memref<8x128xf32, #tpu.memory_space<vmem>>, vector<8x128xf32>,
    } else {
    }
    return
  }
  func.func @transform_0(%arg0: i32, %arg1: i32) -> (i32, i32) {
    %c0_i32 = arith.constant 0 : i32
    %c0_i32_0 = arith.constant 0 : i32
    return %arg0, %c0_i32 : i32, i32
  }
  func.func @transform_1(%arg0: i32, %arg1: i32) -> (i32, i32) {
    %c0_i32 = arith.constant 0 : i32
    %c0_i32_0 = arith.constant 0 : i32
    return %c0_i32, %arg1 : i32, i32
  }
  func.func @transform_2(%arg0: i32, %arg1: i32) -> (i32, i32) {
    %c0_i32 = arith.constant 0 : i32
    %c0_i32_0 = arith.constant 0 : i32
    return %c0_i32, %arg1 : i32, i32
  }
  func.func @transform_3(%arg0: i32, %arg1: i32) -> (i32, i32) {
    %c0_i32 = arith.constant 0 : i32
    %c0_i32_0 = arith.constant 0 : i32
    return %arg1, %c0_i32 : i32, i32
  }
  func.func @transform_4(%arg0: i32, %arg1: i32) -> (i32, i32) {
    %c0_i32 = arith.constant 0 : i32
    %c0_i32_0 = arith.constant 0 : i32
    %c0_i32_1 = arith.constant 0 : i32
    return %c0_i32, %c0_i32_0 : i32, i32
  }
  func.func @transform_5(%arg0: i32, %arg1: i32) -> (i32, i32) {
    %c0_i32 = arith.constant 0 : i32
    %c0_i32_0 = arith.constant 0 : i32
    return %arg0, %c0_i32 : i32, i32
  }
}

</mosaic_0001>

<llo_original>
// kernel: roberta_classification_head.1
$region0: #{roberta_classification_head.1}
  #allocation0 [shape = 'u32[]', space=smem, size = 0x4, offset = 0x4, fixed_abs, tag = 'smem constant byte address 0x4 - core index']
  #allocation1 [shape = 'u32[144,128]{1,0:T(1,128)}', space=vmem, size = 0x12000, scoped, tag = 'internal scratch']
  #allocation2 [shape = 'f32[8,128]{1,0:T(8,128)}', space=vmem, size = 0x1000, scoped, tag = 'scratch operand']
  %s0 = inlined_call_operand.vmem [shape: f32[8,1024], index: 0, kind: input, shape index: {}]
  %s1 = inlined_call_operand.vmem [shape: bf16[128,128], index: 1, kind: input, shape index: {}]
  %s2 = inlined_call_operand.vmem [shape: f32[1,128], index: 2, kind: input, shape index: {}]
  %s3 = inlined_call_operand.vmem [shape: bf16[128,128], index: 3, kind: input, shape index: {}]
  %s4 = inlined_call_operand.vmem [shape: f32[1,128], index: 4, kind: input, shape index: {}]
  %s5 = inlined_call_operand.vmem [shape: f32[8,128], index: 5, kind: output, shape index: {}]
  %s6 = sld [smem:[#allocation0]]
  $region38: #{roberta_classification_head.1} parent=0
    _
  %s8 = ssub.s32 1, %s6
  %s9 = scalar_select 0, %s8, %s6
  // Predicated region
  $region2: #{roberta_classification_head.1} parent=0 // pred_check
    _
  $region3: #{roberta_classification_head.1} parent=0 // pred_check_branch
    %11 = sbr.rel (0) target = $region5
  $region4: #{roberta_classification_head.1} parent=0 // pred_region
    _
  $region5: #{roberta_classification_head.1} parent=0 // pred_fallthru
    _
  // Predicated region
  $region6: #{roberta_classification_head.1} parent=0 // pred_check
    _
  $region7: #{roberta_classification_head.1} parent=0 // pred_check_branch
    %13 = sbr.rel (0) target = $region9
  $region8: #{roberta_classification_head.1} parent=0 // pred_region
    _
  $region9: #{roberta_classification_head.1} parent=0 // pred_fallthru
    _
  // Predicated region
  $region10: #{roberta_classification_head.1} parent=0 // pred_check
    _
  $region11: #{roberta_classification_head.1} parent=0 // pred_check_branch
    %15 = sbr.rel (0) target = $region13
  $region12: #{roberta_classification_head.1} parent=0 // pred_region
    _
  $region13: #{roberta_classification_head.1} parent=0 // pred_fallthru
    _
  // Predicated region
  $region14: #{roberta_classification_head.1} parent=0 // pred_check
    _
  $region15: #{roberta_classification_head.1} parent=0 // pred_check_branch
    %17 = sbr.rel (0) target = $region17
  $region16: #{roberta_classification_head.1} parent=0 // pred_region
    _
  $region17: #{roberta_classification_head.1} parent=0 // pred_fallthru
    _
  // Predicated region
  $region18: #{roberta_classification_head.1} parent=0 // pred_check
    _
  $region19: #{roberta_classification_head.1} parent=0 // pred_check_branch
    %19 = sbr.rel (0) target = $region21
  $region20: #{roberta_classification_head.1} parent=0 // pred_region
    _
  $region21: #{roberta_classification_head.1} parent=0 // pred_fallthru
    _
  %p21 = scmp.eq.s32.totalorder 0, 0
  // Predicated region
  $region22: #{roberta_classification_head.1} parent=0 // pred_check
    %p22 = pneg %p21
  $region23: #{roberta_classification_head.1} parent=0 // pred_check_branch
    %24 = sbr.rel (%p22) target = $region25
  $region24: #{roberta_classification_head.1} parent=0 // pred_region
    %25 = vst [vmem:[#allocation2] sm:$0xff] 0.0
  $region25: #{roberta_classification_head.1} parent=0 // pred_fallthru
    _
  %v26 = vld [vmem:[%s0] sm:$0xff]
  %v27 = vpack.c.bf16 %v26, %v26
  %v28 = vld [vmem:[%s1] sm:$0xf]
  %v29 = vld [vmem:[%s1 + $0x4] sm:$0xf]
  %v30 = vld [vmem:[%s1 + $0x8] sm:$0xf]
  %v31 = vld [vmem:[%s1 + $0xc] sm:$0xf]
  %v32 = vld [vmem:[%s1 + $0x10] sm:$0xf]
  %v33 = vld [vmem:[%s1 + $0x14] sm:$0xf]
  %v34 = vld [vmem:[%s1 + $0x18] sm:$0xf]
  %v35 = vld [vmem:[%s1 + $0x1c] sm:$0xf]
  %v36 = vld [vmem:[%s1 + $0x20] sm:$0xf]
  %v37 = vld [vmem:[%s1 + $0x24] sm:$0xf]
  %v38 = vld [vmem:[%s1 + $0x28] sm:$0xf]
  %v39 = vld [vmem:[%s1 + $0x2c] sm:$0xf]
  %v40 = vld [vmem:[%s1 + $0x30] sm:$0xf]
  %v41 = vld [vmem:[%s1 + $0x34] sm:$0xf]
  %v42 = vld [vmem:[%s1 + $0x38] sm:$0xf]
  %v43 = vld [vmem:[%s1 + $0x3c] sm:$0xf]
  %v44 = vld [vmem:[%s2] sm:$0x1]
  %v46 = vlaneseq
  %v47 = vshrl.u32 %v46, 7
  %v48 = vsub.s32 0, %v47
  %v49 = vrot.slane %v44, %v48
  %v67 = vunpack.c.l.b16 %v28
  %v68 = vunpack.c.l.b16 %v29
  %v69 = vunpack.c.l.b16 %v30
  %v70 = vunpack.c.l.b16 %v31
  %v71 = vunpack.c.l.b16 %v32
  %v72 = vunpack.c.l.b16 %v33
  %v73 = vunpack.c.l.b16 %v34
  %v74 = vunpack.c.l.b16 %v35
  %v75 = vunpack.c.l.b16 %v36
  %v76 = vunpack.c.l.b16 %v37
  %v77 = vunpack.c.l.b16 %v38
  %v78 = vunpack.c.l.b16 %v39
  %v79 = vunpack.c.l.b16 %v40
  %v80 = vunpack.c.l.b16 %v41
  %v81 = vunpack.c.l.b16 %v42
  %v82 = vunpack.c.l.b16 %v43
  %v83 = vpack.c.b16 %v68, %v67
  %v84 = vpack.c.b16 %v70, %v69
  %v85 = vpack.c.b16 %v72, %v71
  %v86 = vpack.c.b16 %v74, %v73
  %v87 = vpack.c.b16 %v76, %v75
  %v88 = vpack.c.b16 %v78, %v77
  %v89 = vpack.c.b16 %v80, %v79
  %v90 = vpack.c.b16 %v82, %v81
  %99 = vmatprep.subr.bf16.mxu0 0
  %100 = vmatpush1.bf16.msra.mxu0 %v83
  %101 = vmatprep.subr.bf16.mxu0 0
  %102 = vmatpush1.bf16.msra.mxu0 %v84
  %103 = vmatprep.subr.bf16.mxu0 0
  %104 = vmatpush1.bf16.msra.mxu0 %v85
  %105 = vmatprep.subr.bf16.mxu0 0
  %106 = vmatpush1.bf16.msra.mxu0 %v86
  %107 = vmatprep.subr.bf16.mxu0 0
  %108 = vmatpush1.bf16.msra.mxu0 %v87
  %109 = vmatprep.subr.bf16.mxu0 0
  %110 = vmatpush1.bf16.msra.mxu0 %v88
  %111 = vmatprep.subr.bf16.mxu0 0
  %112 = vmatpush1.bf16.msra.mxu0 %v89
  %113 = vmatprep.subr.bf16.mxu0 0
  %114 = vmatpush1.bf16.msra.mxu0 %v90
  %115 = vmatprep.subr.bf16.mxu0 0
  %116 = vmatpush1.bf16.msra.mxu0 0
  %117 = vmatprep.subr.bf16.mxu0 0
  %118 = vmatpush1.bf16.msra.mxu0 0
  %119 = vmatprep.subr.bf16.mxu0 0
  %120 = vmatpush1.bf16.msra.mxu0 0
  %121 = vmatprep.subr.bf16.mxu0 0
  %122 = vmatpush1.bf16.msra.mxu0 0
  %123 = vmatprep.subr.bf16.mxu0 0
  %124 = vmatpush1.bf16.msra.mxu0 0
  %125 = vmatprep.subr.bf16.mxu0 0
  %126 = vmatpush1.bf16.msra.mxu0 0
  %127 = vmatprep.subr.bf16.mxu0 0
  %128 = vmatpush1.bf16.msra.mxu0 0
  %129 = vmatprep.subr.bf16.mxu0 0
  %130 = vmatpush1.bf16.msra.mxu0 0
  %131 = vmatprep.mubr.bf16.mxu0 0
  %132 = vmatmul.mubr.bf16.gmra.mrb[0].mxu0 %v27
  %v133 = vpop.f32.mrb[0].mxu0
  %v134 = vadd.f32 %v49, %v133
  %v135 = vpop.f32.mrb[0].mxu0
  %v136 = vpop.f32.mrb[0].mxu0
  %v137 = vpop.f32.mrb[0].mxu0
  %138 = vdwg.mxu0
  %v139 = vtanh.pop %v134
  %v140 = vld [vmem:[#allocation2] sm:$0xff]
  %v141 = vpack.c.bf16 %v139, %v139
  %v142 = vld [vmem:[%s3] sm:$0xf]
  %v143 = vld [vmem:[%s3 + $0x4] sm:$0xf]
  %v144 = vld [vmem:[%s3 + $0x8] sm:$0xf]
  %v145 = vld [vmem:[%s3 + $0xc] sm:$0xf]
  %v146 = vld [vmem:[%s3 + $0x10] sm:$0xf]
  %v147 = vld [vmem:[%s3 + $0x14] sm:$0xf]
  %v148 = vld [vmem:[%s3 + $0x18] sm:$0xf]
  %v149 = vld [vmem:[%s3 + $0x1c] sm:$0xf]
  %v150 = vld [vmem:[%s3 + $0x20] sm:$0xf]
  %v151 = vld [vmem:[%s3 + $0x24] sm:$0xf]
  %v152 = vld [vmem:[%s3 + $0x28] sm:$0xf]
  %v153 = vld [vmem:[%s3 + $0x2c] sm:$0xf]
  %v154 = vld [vmem:[%s3 + $0x30] sm:$0xf]
  %v155 = vld [vmem:[%s3 + $0x34] sm:$0xf]
  %v156 = vld [vmem:[%s3 + $0x38] sm:$0xf]
  %v157 = vld [vmem:[%s3 + $0x3c] sm:$0xf]
  %v174 = vunpack.c.l.b16 %v142
  %v175 = vunpack.c.l.b16 %v143
  %v176 = vunpack.c.l.b16 %v144
  %v177 = vunpack.c.l.b16 %v145
  %v178 = vunpack.c.l.b16 %v146
  %v179 = vunpack.c.l.b16 %v147
  %v180 = vunpack.c.l.b16 %v148
  %v181 = vunpack.c.l.b16 %v149
  %v182 = vunpack.c.l.b16 %v150
  %v183 = vunpack.c.l.b16 %v151
  %v184 = vunpack.c.l.b16 %v152
  %v185 = vunpack.c.l.b16 %v153
  %v186 = vunpack.c.l.b16 %v154
  %v187 = vunpack.c.l.b16 %v155
  %v188 = vunpack.c.l.b16 %v156
  %v189 = vunpack.c.l.b16 %v157
  %v190 = vpack.c.b16 %v175, %v174
  %v191 = vpack.c.b16 %v177, %v176
  %v192 = vpack.c.b16 %v179, %v178
  %v193 = vpack.c.b16 %v181, %v180
  %v194 = vpack.c.b16 %v183, %v182
  %v195 = vpack.c.b16 %v185, %v184
  %v196 = vpack.c.b16 %v187, %v186
  %v197 = vpack.c.b16 %v189, %v188
  %206 = vmatprep.subr.bf16.mxu0 0
  %207 = vmatpush1.bf16.msra.mxu0 %v190
  %208 = vmatprep.subr.bf16.mxu0 0
  %209 = vmatpush1.bf16.msra.mxu0 %v191
  %210 = vmatprep.subr.bf16.mxu0 0
  %211 = vmatpush1.bf16.msra.mxu0 %v192
  %212 = vmatprep.subr.bf16.mxu0 0
  %213 = vmatpush1.bf16.msra.mxu0 %v193
  %214 = vmatprep.subr.bf16.mxu0 0
  %215 = vmatpush1.bf16.msra.mxu0 %v194
  %216 = vmatprep.subr.bf16.mxu0 0
  %217 = vmatpush1.bf16.msra.mxu0 %v195
  %218 = vmatprep.subr.bf16.mxu0 0
  %219 = vmatpush1.bf16.msra.mxu0 %v196
  %220 = vmatprep.subr.bf16.mxu0 0
  %221 = vmatpush1.bf16.msra.mxu0 %v197
  %222 = vmatprep.subr.bf16.mxu0 0
  %223 = vmatpush1.bf16.msra.mxu0 0
  %224 = vmatprep.subr.bf16.mxu0 0
  %225 = vmatpush1.bf16.msra.mxu0 0
  %226 = vmatprep.subr.bf16.mxu0 0
  %227 = vmatpush1.bf16.msra.mxu0 0
  %228 = vmatprep.subr.bf16.mxu0 0
  %229 = vmatpush1.bf16.msra.mxu0 0
  %230 = vmatprep.subr.bf16.mxu0 0
  %231 = vmatpush1.bf16.msra.mxu0 0
  %232 = vmatprep.subr.bf16.mxu0 0
  %233 = vmatpush1.bf16.msra.mxu0 0
  %234 = vmatprep.subr.bf16.mxu0 0
  %235 = vmatpush1.bf16.msra.mxu0 0
  %236 = vmatprep.subr.bf16.mxu0 0
  %237 = vmatpush1.bf16.msra.mxu0 0
  %238 = vmatprep.mubr.bf16.mxu0 0
  %239 = vmatmul.mubr.bf16.gmra.mrb[0].mxu0 %v141
  %v240 = vpop.f32.mrb[0].mxu0
  %v241 = vadd.f32 0.0, %v240
  %v242 = vpop.f32.mrb[0].mxu0
  %v243 = vpop.f32.mrb[0].mxu0
  %v244 = vpop.f32.mrb[0].mxu0
  %245 = vdwg.mxu0
  %v246 = vadd.f32 %v140, %v241
  %247 = vst [vmem:[#allocation2] sm:$0xff] %v246
  // Predicated region
  $region26: #{roberta_classification_head.1} parent=0 // pred_check
    %p248 = pneg %p21
  $region27: #{roberta_classification_head.1} parent=0 // pred_check_branch
    %250 = sbr.rel (%p248) target = $region29
  $region28: #{roberta_classification_head.1} parent=0 // pred_region
    %v251 = vld [vmem:[#allocation2] sm:$0xff]
    %v252 = vld [vmem:[%s4] sm:$0x1]
    %v254 = vlaneseq
    %v255 = vshrl.u32 %v254, 7
    %v256 = vsub.s32 0, %v255
    %v257 = vrot.slane %v252, %v256
    %v259 = vadd.f32 %v251, %v257
    %260 = vst [vmem:[%s5] sm:$0xff] %v259
  $region29: #{roberta_classification_head.1} parent=0 // pred_fallthru
    _
  // Predicated region
  $region30: #{roberta_classification_head.1} parent=0 // pred_check
    _
  $region31: #{roberta_classification_head.1} parent=0 // pred_check_branch
    %262 = sbr.rel (0) target = $region33
  $region32: #{roberta_classification_head.1} parent=0 // pred_region
    _
  $region33: #{roberta_classification_head.1} parent=0 // pred_fallthru
    _
  // Predicated region
  $region34: #{roberta_classification_head.1} parent=0 // pred_check
    _
  $region35: #{roberta_classification_head.1} parent=0 // pred_check_branch
    %264 = sbr.rel (0) target = $region37
  $region36: #{roberta_classification_head.1} parent=0 // pred_region
    _
  $region37: #{roberta_classification_head.1} parent=0 // pred_fallthru
    _

</llo_original>
